<compile_context>
chip_gen: v6e
topology: v6e:2x2x1
jax: 0.10.0
libtpu: 0.0.40
codegen_flags: <defaults>
</compile_context>

<pallas_src>
import math

import jax
import jax.numpy as jnp
from jax import lax
from jax.experimental import pallas as pl
from jax.experimental.pallas import tpu as pltpu


# ----------------------------------------------------------------------------
# Pallas kernel
# ----------------------------------------------------------------------------
def _layernorm(h, gamma_row, beta_row, eps=1e-5):
    """PyTorch-style LayerNorm over the last (lane) axis, biased variance.

    One-pass form: sum(h) and sum(h*h) are two *independent* cross-lane
    reductions (var = E[h^2] - E[h]^2), so both can issue concurrently on the
    XLU units instead of serializing mean -> center -> mean(c*c).
    """
    inv_n = 1.0 / h.shape[-1]
    s1 = jnp.sum(h, axis=-1, keepdims=True) * inv_n          # E[h]
    s2 = jnp.sum(h * h, axis=-1, keepdims=True) * inv_n      # E[h^2]
    var = jnp.maximum(s2 - s1 * s1, 0.0)
    return (h - s1) * lax.rsqrt(var + eps) * gamma_row + beta_row


def actor_kernel(x_ref, w1_ref, v1_ref, w2_ref, v2_ref, tail_ref, mu_ref):
    """One batch tile: (Bt, Din) -> (1, Bt) lane-dense mu row.

    x_ref    : (Bt, Din)   activations (batch on sublanes), matmul dtype
    w1_ref   : (Din, F1)   first linear weight, matmul dtype
    v1_ref   : (3, F1)     rows = [bias1, ln1_gamma, ln1_beta], f32
    w2_ref   : (F1, F2)    second linear weight, matmul dtype
    v2_ref   : (3, F2)     rows = [bias2, ln2_gamma, ln2_beta], f32
    tail_ref : (2, F2)     row0 = w3 (F2->1 weight), row1[0] = bias3, f32
    mu_ref   : (1, Bt)     output mean (lane-dense)
    """
    x = x_ref[...]
    w1 = w1_ref[...]
    w2 = w2_ref[...]

    v1 = v1_ref[...]
    h = jnp.dot(x, w1, preferred_element_type=jnp.float32) + v1[0:1, :]
    h = _layernorm(h, v1[1:2, :], v1[2:3, :])
    h = jnp.maximum(h, 0.0)

    v2 = v2_ref[...]
    h = jnp.dot(h.astype(w2.dtype), w2,
                preferred_element_type=jnp.float32) + v2[0:1, :]
    h = _layernorm(h, v2[1:2, :], v2[2:3, :])
    h = jnp.maximum(h, 0.0)

    # Final F2 -> 1 projection on the VPU/XLU: broadcast multiply + lane
    # reduce (a 1-column MXU matmul would waste an entire systolic pass).
    # Result is written as a lane-dense (1, Bt) row -> unmasked stores.
    tail = tail_ref[...]
    mu_row = jnp.sum(h * tail[0:1, :], axis=-1)[None, :] + tail[1:2, 0:1]
    mu_ref[...] = mu_row


# ----------------------------------------------------------------------------
# Wrapper
# ----------------------------------------------------------------------------
def _round_up(x, m):
    return ((x + m - 1) // m) * m


def actor_forward(state, params, *, block_b=1024, matmul_dtype=jnp.bfloat16):
    """state: (B, Din) float32  ->  (mu (B,1), sigma (B,1))."""
    w1, b1 = params["w1"], params["b1"]
    w2, b2 = params["w2"], params["b2"]
    w3, b3 = params["w3"], params["b3"]
    g1, be1 = params["ln1_g"], params["ln1_b"]
    g2, be2 = params["ln2_g"], params["ln2_b"]
    sigma = params["sigma"]

    b, din = state.shape
    f1 = w1.shape[1]
    f2 = w2.shape[1]

    # Pack the per-feature vectors into a few small f32 operands.
    v1 = jnp.stack([b1, g1, be1], axis=0)                           # (3, F1)
    v2 = jnp.stack([b2, g2, be2], axis=0)                           # (3, F2)
    tail = jnp.concatenate(
        [w3.reshape(1, f2),
         jnp.pad(b3.reshape(1, 1), ((0, 0), (0, f2 - 1)))], axis=0)  # (2, F2)

    # Adaptive batch tiling:
    #  * small batches -> single tile padded only to a multiple of 8,
    #  * large batches -> minimum number of tiles at <= block_b rows each,
    #    evenly split and rounded to 128 (lane-dense output blocks, and the
    #    last tile is never mostly padding).
    block_b = max(int(block_b), 8)
    bpad8 = _round_up(b, 8)
    if bpad8 <= block_b:
        n_tiles = 1
        bt = bpad8
    else:
        n_tiles = pl.cdiv(b, block_b)
        bt = _round_up(pl.cdiv(b, n_tiles), 128)
    bpad = n_tiles * bt

    x = state.astype(matmul_dtype)
    if bpad != b:
        x = jnp.pad(x, ((0, bpad - b), (0, 0)))

    mu_row = pl.pallas_call(
        actor_kernel,
        out_shape=jax.ShapeDtypeStruct((1, bpad), jnp.float32),
        grid=(n_tiles,),
        in_specs=[
            pl.BlockSpec((bt, din), lambda i: (i, 0)),
            pl.BlockSpec((din, f1), lambda i: (0, 0)),
            pl.BlockSpec((3, f1), lambda i: (0, 0)),
            pl.BlockSpec((f1, f2), lambda i: (0, 0)),
            pl.BlockSpec((3, f2), lambda i: (0, 0)),
            pl.BlockSpec((2, f2), lambda i: (0, 0)),
        ],
        out_specs=pl.BlockSpec((1, bt), lambda i: (0, i)),
        compiler_params=pltpu.CompilerParams(
            dimension_semantics=("parallel",),
            vmem_limit_bytes=32 * 1024 * 1024),
    )(x, w1.astype(matmul_dtype), v1, w2.astype(matmul_dtype), v2, tail)

    mu = mu_row.reshape(bpad, 1)[:b]
    sigma_out = jnp.broadcast_to(sigma.reshape(1, 1), mu.shape)  # expand_as(mu)
    return mu, sigma_out


# ----------------------------------------------------------------------------
# Pure-JAX references for validation
# ----------------------------------------------------------------------------
def ref_forward(state, params):
    """Exact f32 reference of the PyTorch module."""
    def ln(x, g, b, eps=1e-5):
        m = jnp.mean(x, axis=-1, keepdims=True)
        v = jnp.mean((x - m) ** 2, axis=-1, keepdims=True)
        return (x - m) / jnp.sqrt(v + eps) * g + b

    h = jax.nn.relu(ln(state @ params["w1"] + params["b1"],
                       params["ln1_g"], params["ln1_b"]))
    h = jax.nn.relu(ln(h @ params["w2"] + params["b2"],
                       params["ln2_g"], params["ln2_b"]))
    mu = h @ params["w3"] + params["b3"]
    sigma = jnp.broadcast_to(params["sigma"].reshape(1, 1), mu.shape)
    return mu, sigma


def ref_forward_kernel_math(state, params, matmul_dtype):
    """Mirrors the kernel's math (bf16 matmul operands, f32 vector math)."""
    x = state.astype(matmul_dtype)
    w1 = params["w1"].astype(matmul_dtype)
    w2 = params["w2"].astype(matmul_dtype)
    h = jnp.dot(x, w1, preferred_element_type=jnp.float32) + params["b1"]
    h = jnp.maximum(_layernorm(h, params["ln1_g"], params["ln1_b"]), 0.0)
    h = jnp.dot(h.astype(matmul_dtype), w2,
                preferred_element_type=jnp.float32) + params["b2"]
    h = jnp.maximum(_layernorm(h, params["ln2_g"], params["ln2_b"]), 0.0)
    mu = jnp.sum(h * params["w3"].reshape(1, -1), axis=-1, keepdims=True) \
        + params["b3"]
    sigma = jnp.broadcast_to(params["sigma"].reshape(1, 1), mu.shape)
    return mu, sigma


# ----------------------------------------------------------------------------
# Deterministic synthetic parameters (mirrors the module's __init__ shapes;
# weights stored as (in, out) so x @ W matches torch's x @ W.T convention)
# ----------------------------------------------------------------------------
def init_params(key, din, f1, f2):
    ks = jax.random.split(key, 7)

    def linear(k, fin, fout):
        kw, kb = jax.random.split(k)
        bound = 1.0 / math.sqrt(fin)
        w = jax.random.uniform(kw, (fin, fout), jnp.float32, -bound, bound)
        b = jax.random.uniform(kb, (fout,), jnp.float32, -bound, bound)
        return w, b

    w1, b1 = linear(ks[0], din, f1)
    w2, b2 = linear(ks[1], f1, f2)
    w3, b3 = linear(ks[2], f2, 1)
    # random LayerNorm affine params so the check actually exercises LN
    g1 = jax.random.uniform(ks[3], (f1,), jnp.float32, 0.5, 1.5)
    be1 = jax.random.uniform(ks[4], (f1,), jnp.float32, -0.1, 0.1)
    g2 = jax.random.uniform(ks[5], (f2,), jnp.float32, 0.5, 1.5)
    be2 = jax.random.uniform(ks[6], (f2,), jnp.float32, -0.1, 0.1)
    sigma = jnp.ones((1,), jnp.float32)          # nn.Parameter(T.ones(1))
    return dict(w1=w1, b1=b1, ln1_g=g1, ln1_b=be1,
                w2=w2, b2=b2, ln2_g=g2, ln2_b=be2,
                w3=w3, b3=b3, sigma=sigma)


def _check_close(name, got, want, rtol, atol):
    if not jnp.allclose(got, want, rtol=rtol, atol=atol):
        raise AssertionError(
            f"{name} mismatch, max|diff|={float(jnp.max(jnp.abs(got - want)))}")


if __name__ == "__main__":
    key = jax.random.PRNGKey(0)
    k_x, k_p, k_x2 = jax.random.split(key, 3)

    # Small shapes consistent with the module: batch=6 observations of 16
    # features, fc1_dims = fc2_dims = 256 (the module defaults).
    B, DIN, F1, F2 = 6, 16, 256, 256

    state = jax.random.normal(k_x, (B, DIN), jnp.float32)
    params = init_params(k_p, DIN, F1, F2)
    mu_ref, sigma_ref = ref_forward(state, params)

    # 1) Exact f32 matmul path (single tile).
    mu32, sig32 = jax.block_until_ready(
        actor_forward(state, params, matmul_dtype=jnp.float32))
    assert mu32.shape == mu_ref.shape == (B, 1)
    assert sig32.shape == sigma_ref.shape == (B, 1)
    _check_close("mu (f32 path)", mu32, mu_ref, rtol=1e-4, atol=1e-4)
    _check_close("sigma", sig32, sigma_ref, rtol=1e-6, atol=1e-6)

    # 2) Default bf16-MXU path: tight vs a bf16-matched reference, loose
    #    (bf16 input-rounding level) vs the exact f32 reference.
    mu_bf, sig_bf = jax.block_until_ready(actor_forward(state, params))
    mu_match, _ = ref_forward_kernel_math(state, params, jnp.bfloat16)
    _check_close("mu (bf16 vs matched ref)", mu_bf, mu_match,
                 rtol=2e-3, atol=2e-3)
    _check_close("mu (bf16 vs f32 ref)", mu_bf, mu_ref, rtol=5e-2, atol=5e-2)
    _check_close("sigma (bf16 path)", sig_bf, sigma_ref, rtol=1e-6, atol=1e-6)

    # 3) Multi-tile grid path (exercises adaptive tiling, batch padding and
    #    the lane-dense tiled mu output across several grid steps).
    B2 = 300
    state2 = jax.random.normal(k_x2, (B2, DIN), jnp.float32)
    mu2, sig2 = jax.block_until_ready(
        actor_forward(state2, params, block_b=128, matmul_dtype=jnp.float32))
    mu2_ref, sig2_ref = ref_forward(state2, params)
    assert mu2.shape == (B2, 1) and sig2.shape == (B2, 1)
    _check_close("mu (multi-tile)", mu2, mu2_ref, rtol=1e-4, atol=1e-4)
    _check_close("sigma (multi-tile)", sig2, sig2_ref, rtol=1e-6, atol=1e-6)

    # TODO(synk): sample_normal (Normal sampling + tanh + log_prob) is not part
    # of forward() and is left to host-side jax.random if needed.
    print("KERNEL_OK")
</pallas_src>

<mosaic_0001>
module attributes {stable_mosaic.version = 11 : i64} {
  func.func @actor_kernel(%arg0: i32, %arg1: memref<8x16xf32, #tpu.memory_space<vmem>>, %arg2: memref<16x256xf32, #tpu.memory_space<vmem>>, %arg3: memref<3x256xf32, #tpu.memory_space<vmem>>, %arg4: memref<256x256xf32, #tpu.memory_space<vmem>>, %arg5: memref<3x256xf32, #tpu.memory_space<vmem>>, %arg6: memref<2x256xf32, #tpu.memory_space<vmem>>, %arg7: memref<1x8xf32, #tpu.memory_space<vmem>>) attributes {dimension_semantics = [#tpu.dimension_semantics<parallel>], iteration_bounds = array<i64: 1>, scalar_prefetch = 0 : i64, scratch_operands = 0 : i64, tpu.core_type = #tpu.core_type<tc>, window_params = [{transform_indices = @transform_0, window_bounds = array<i64: 8, 16>}, {pipeline_mode = #tpu.pipeline_mode<synchronous>, transform_indices = @transform_1, window_bounds = array<i64: 16, 256>}, {pipeline_mode = #tpu.pipeline_mode<synchronous>, transform_indices = @transform_2, window_bounds = array<i64: 3, 256>}, {pipeline_mode = #tpu.pipeline_mode<synchronous>, transform_indices = @transform_3, window_bounds = array<i64: 256, 256>}, {pipeline_mode = #tpu.pipeline_mode<synchronous>, transform_indices = @transform_4, window_bounds = array<i64: 3, 256>}, {pipeline_mode = #tpu.pipeline_mode<synchronous>, transform_indices = @transform_5, window_bounds = array<i64: 2, 256>}, {transform_indices = @transform_6, window_bounds = array<i64: 1, 8>}]} {
    %c0 = arith.constant 0 : index
    %c0_0 = arith.constant 0 : index
    %0 = vector.load %arg1[%c0, %c0_0] : memref<8x16xf32, #tpu.memory_space<vmem>>, vector<8x16xf32>
    %c0_1 = arith.constant 0 : index
    %c0_2 = arith.constant 0 : index
    %1 = vector.load %arg2[%c0_1, %c0_2] : memref<16x256xf32, #tpu.memory_space<vmem>>, vector<16x256xf32>
    %c0_3 = arith.constant 0 : index
    %c0_4 = arith.constant 0 : index
    %2 = vector.load %arg4[%c0_3, %c0_4] : memref<256x256xf32, #tpu.memory_space<vmem>>, vector<256x256xf32>
    %c0_5 = arith.constant 0 : index
    %c0_6 = arith.constant 0 : index
    %3 = vector.load %arg3[%c0_5, %c0_6] : memref<3x256xf32, #tpu.memory_space<vmem>>, vector<3x256xf32>
    %cst = arith.constant dense<0.000000e+00> : vector<8x256xf32>
    %4 = tpu.matmul %0, %1, %cst {dimension_numbers = #tpu.dot_dimension_numbers<[1], [0], [0], [1], [0, 0, 1, 1], [], []>} : vector<8x16xf32>, vector<16x256xf32>, vector<8x256xf32> -> vector<8x256xf32>
    %5 = vector.extract_strided_slice %3 {offsets = [0, 0], sizes = [1, 256], strides = [1, 1]} : vector<3x256xf32> to vector<1x256xf32>
    %6 = vector.broadcast %5 : vector<1x256xf32> to vector<8x256xf32>
    %7 = arith.addf %4, %6 : vector<8x256xf32>
    %8 = vector.extract_strided_slice %3 {offsets = [1, 0], sizes = [1, 256], strides = [1, 1]} : vector<3x256xf32> to vector<1x256xf32>
    %9 = vector.extract_strided_slice %3 {offsets = [2, 0], sizes = [1, 256], strides = [1, 1]} : vector<3x256xf32> to vector<1x256xf32>
    %cst_7 = arith.constant dense<0.000000e+00> : vector<8xf32>
    %10 = vector.multi_reduction <add>, %7, %cst_7 [1] : vector<8x256xf32> to vector<8xf32>
    %11 = vector.shape_cast %10 : vector<8xf32> to vector<8x1xf32>
    %cst_8 = arith.constant 3.906250e-03 : f32
    %12 = vector.broadcast %cst_8 : f32 to vector<8x1xf32>
    %13 = arith.mulf %11, %12 : vector<8x1xf32>
    %14 = arith.mulf %7, %7 : vector<8x256xf32>
    %cst_9 = arith.constant dense<0.000000e+00> : vector<8xf32>
    %15 = vector.multi_reduction <add>, %14, %cst_9 [1] : vector<8x256xf32> to vector<8xf32>
    %16 = vector.shape_cast %15 : vector<8xf32> to vector<8x1xf32>
    %cst_10 = arith.constant 3.906250e-03 : f32
    %17 = vector.broadcast %cst_10 : f32 to vector<8x1xf32>
    %18 = arith.mulf %16, %17 : vector<8x1xf32>
    %19 = arith.mulf %13, %13 : vector<8x1xf32>
    %20 = arith.subf %18, %19 : vector<8x1xf32>
    %cst_11 = arith.constant 0.000000e+00 : f32
    %21 = vector.broadcast %cst_11 : f32 to vector<8x1xf32>
    %22 = arith.maximumf %20, %21 : vector<8x1xf32>
    %23 = vector.broadcast %13 : vector<8x1xf32> to vector<8x256xf32>
    %24 = arith.subf %7, %23 : vector<8x256xf32>
    %cst_12 = arith.constant 9.99999974E-6 : f32
    %25 = vector.broadcast %cst_12 : f32 to vector<8x1xf32>
    %26 = arith.addf %22, %25 : vector<8x1xf32>
    %27 = math.rsqrt %26 : vector<8x1xf32>
    %28 = vector.broadcast %27 : vector<8x1xf32> to vector<8x256xf32>
    %29 = arith.mulf %24, %28 : vector<8x256xf32>
    %30 = vector.broadcast %8 : vector<1x256xf32> to vector<8x256xf32>
    %31 = arith.mulf %29, %30 : vector<8x256xf32>
    %32 = vector.broadcast %9 : vector<1x256xf32> to vector<8x256xf32>
    %33 = arith.addf %31, %32 : vector<8x256xf32>
    %cst_13 = arith.constant 0.000000e+00 : f32
    %34 = vector.broadcast %cst_13 : f32 to vector<8x256xf32>
    %35 = arith.maximumf %33, %34 : vector<8x256xf32>
    %c0_14 = arith.constant 0 : index
    %c0_15 = arith.constant 0 : index
    %36 = vector.load %arg5[%c0_14, %c0_15] : memref<3x256xf32, #tpu.memory_space<vmem>>, vector<3x256xf32>
    %cst_16 = arith.constant dense<0.000000e+00> : vector<8x256xf32>
    %37 = tpu.matmul %35, %2, %cst_16 {dimension_numbers = #tpu.dot_dimension_numbers<[1], [0], [0], [1], [0, 0, 1, 1], [], []>} : vector<8x256xf32>, vector<256x256xf32>, vector<8x256xf32> -> vector<8x256xf32>
    %38 = vector.extract_strided_slice %36 {offsets = [0, 0], sizes = [1, 256], strides = [1, 1]} : vector<3x256xf32> to vector<1x256xf32>
    %39 = vector.broadcast %38 : vector<1x256xf32> to vector<8x256xf32>
    %40 = arith.addf %37, %39 : vector<8x256xf32>
    %41 = vector.extract_strided_slice %36 {offsets = [1, 0], sizes = [1, 256], strides = [1, 1]} : vector<3x256xf32> to vector<1x256xf32>
    %42 = vector.extract_strided_slice %36 {offsets = [2, 0], sizes = [1, 256], strides = [1, 1]} : vector<3x256xf32> to vector<1x256xf32>
    %cst_17 = arith.constant dense<0.000000e+00> : vector<8xf32>
    %43 = vector.multi_reduction <add>, %40, %cst_17 [1] : vector<8x256xf32> to vector<8xf32>
    %44 = vector.shape_cast %43 : vector<8xf32> to vector<8x1xf32>
    %cst_18 = arith.constant 3.906250e-03 : f32
    %45 = vector.broadcast %cst_18 : f32 to vector<8x1xf32>
    %46 = arith.mulf %44, %45 : vector<8x1xf32>
    %47 = arith.mulf %40, %40 : vector<8x256xf32>
    %cst_19 = arith.constant dense<0.000000e+00> : vector<8xf32>
    %48 = vector.multi_reduction <add>, %47, %cst_19 [1] : vector<8x256xf32> to vector<8xf32>
    %49 = vector.shape_cast %48 : vector<8xf32> to vector<8x1xf32>
    %cst_20 = arith.constant 3.906250e-03 : f32
    %50 = vector.broadcast %cst_20 : f32 to vector<8x1xf32>
    %51 = arith.mulf %49, %50 : vector<8x1xf32>
    %52 = arith.mulf %46, %46 : vector<8x1xf32>
    %53 = arith.subf %51, %52 : vector<8x1xf32>
    %cst_21 = arith.constant 0.000000e+00 : f32
    %54 = vector.broadcast %cst_21 : f32 to vector<8x1xf32>
    %55 = arith.maximumf %53, %54 : vector<8x1xf32>
    %56 = vector.broadcast %46 : vector<8x1xf32> to vector<8x256xf32>
    %57 = arith.subf %40, %56 : vector<8x256xf32>
    %cst_22 = arith.constant 9.99999974E-6 : f32
    %58 = vector.broadcast %cst_22 : f32 to vector<8x1xf32>
    %59 = arith.addf %55, %58 : vector<8x1xf32>
    %60 = math.rsqrt %59 : vector<8x1xf32>
    %61 = vector.broadcast %60 : vector<8x1xf32> to vector<8x256xf32>
    %62 = arith.mulf %57, %61 : vector<8x256xf32>
    %63 = vector.broadcast %41 : vector<1x256xf32> to vector<8x256xf32>
    %64 = arith.mulf %62, %63 : vector<8x256xf32>
    %65 = vector.broadcast %42 : vector<1x256xf32> to vector<8x256xf32>
    %66 = arith.addf %64, %65 : vector<8x256xf32>
    %cst_23 = arith.constant 0.000000e+00 : f32
    %67 = vector.broadcast %cst_23 : f32 to vector<8x256xf32>
    %68 = arith.maximumf %66, %67 : vector<8x256xf32>
    %c0_24 = arith.constant 0 : index
    %c0_25 = arith.constant 0 : index
    %69 = vector.load %arg6[%c0_24, %c0_25] : memref<2x256xf32, #tpu.memory_space<vmem>>, vector<2x256xf32>
    %70 = vector.extract_strided_slice %69 {offsets = [0, 0], sizes = [1, 256], strides = [1, 1]} : vector<2x256xf32> to vector<1x256xf32>
    %71 = vector.broadcast %70 : vector<1x256xf32> to vector<8x256xf32>
    %72 = arith.mulf %68, %71 : vector<8x256xf32>
    %cst_26 = arith.constant dense<0.000000e+00> : vector<8xf32>
    %73 = vector.multi_reduction <add>, %72, %cst_26 [1] : vector<8x256xf32> to vector<8xf32>
    %74 = vector.shape_cast %73 : vector<8xf32> to vector<1x8xf32>
    %75 = vector.extract_strided_slice %69 {offsets = [1, 0], sizes = [1, 1], strides = [1, 1]} : vector<2x256xf32> to vector<1x1xf32>
    %76 = vector.broadcast %75 : vector<1x1xf32> to vector<1x8xf32>
    %77 = arith.addf %74, %76 : vector<1x8xf32>
    %c0_27 = arith.constant 0 : index
    %c0_28 = arith.constant 0 : index
    %78 = vector.load %arg7[%c0_27, %c0_28] : memref<1x8xf32, #tpu.memory_space<vmem>>, vector<1x8xf32>
    tpu.vector_store %arg7[%c0_27, %c0_28], %77 {strides = array<i32>} : memref<1x8xf32, #tpu.memory_space<vmem>>, vector<1x8xf32>,
    return
  }
  func.func @transform_0(%arg0: i32) -> (i32, i32) {
    %c0_i32 = arith.constant 0 : i32
    %c0_i32_0 = arith.constant 0 : i32
    return %arg0, %c0_i32 : i32, i32
  }
  func.func @transform_1(%arg0: i32) -> (i32, i32) {
    %c0_i32 = arith.constant 0 : i32
    %c0_i32_0 = arith.constant 0 : i32
    %c0_i32_1 = arith.constant 0 : i32
    return %c0_i32, %c0_i32_0 : i32, i32
  }
  func.func @transform_2(%arg0: i32) -> (i32, i32) {
    %c0_i32 = arith.constant 0 : i32
    %c0_i32_0 = arith.constant 0 : i32
    %c0_i32_1 = arith.constant 0 : i32
    return %c0_i32, %c0_i32_0 : i32, i32
  }
  func.func @transform_3(%arg0: i32) -> (i32, i32) {
    %c0_i32 = arith.constant 0 : i32
    %c0_i32_0 = arith.constant 0 : i32
    %c0_i32_1 = arith.constant 0 : i32
    return %c0_i32, %c0_i32_0 : i32, i32
  }
  func.func @transform_4(%arg0: i32) -> (i32, i32) {
    %c0_i32 = arith.constant 0 : i32
    %c0_i32_0 = arith.constant 0 : i32
    %c0_i32_1 = arith.constant 0 : i32
    return %c0_i32, %c0_i32_0 : i32, i32
  }
  func.func @transform_5(%arg0: i32) -> (i32, i32) {
    %c0_i32 = arith.constant 0 : i32
    %c0_i32_0 = arith.constant 0 : i32
    %c0_i32_1 = arith.constant 0 : i32
    return %c0_i32, %c0_i32_0 : i32, i32
  }
  func.func @transform_6(%arg0: i32) -> (i32, i32) {
    %c0_i32 = arith.constant 0 : i32
    %c0_i32_0 = arith.constant 0 : i32
    return %c0_i32, %arg0 : i32, i32
  }
}

</mosaic_0001>

<llo_original>
// kernel: tpu_custom_call.1
$region0: #{tpu_custom_call.1}
  #allocation0 [shape = 'u32[]', space=smem, size = 0x4, offset = 0x4, fixed_abs, tag = 'smem constant byte address 0x4 - core index']
  #allocation1 [shape = 'u32[144,128]{1,0:T(1,128)}', space=vmem, size = 0x12000, scoped, tag = 'internal scratch']
  %s0 = inlined_call_operand.hbm [shape: f32[8,16], index: 0, kind: input, shape index: {}]
  %s1 = inlined_call_operand.hbm [shape: f32[16,256], index: 1, kind: input, shape index: {}]
  %s2 = inlined_call_operand.hbm [shape: f32[3,256], index: 2, kind: input, shape index: {}]
  %s3 = inlined_call_operand.hbm [shape: f32[256,256], index: 3, kind: input, shape index: {}]
  %s4 = inlined_call_operand.hbm [shape: f32[3,256], index: 4, kind: input, shape index: {}]
  %s5 = inlined_call_operand.vmem [shape: f32[2,256], index: 5, kind: input, shape index: {}]
  %s6 = inlined_call_operand.hbm [shape: f32[1,8], index: 6, kind: output, shape index: {}]
  %s7 = sld [smem:[#allocation0]]
  $region54: #{tpu_custom_call.1} parent=0
    _
  %s9 = ssub.s32 1, %s7
  %s10 = scalar_select 0, %s9, %s7
  $region1: #{tpu_custom_call.1} parent=0
    #allocation2 [shape = 'u8[4096]{0}', space=vmem, size = 0x1000, scoped, tag = 'input window, operand 0, single buffered']
    #allocation3 [shape = 's32[1]{0}', space=sflag, size = 0x4, scoped, tag = 'scoped memory for tpu_custom_call.1']
    #allocation4 [shape = 's32[1]{0}', space=sflag, size = 0x4, scoped, tag = 'scoped memory for tpu_custom_call.1']
    #allocation5 [shape = 'u8[16384]{0}', space=vmem, size = 0x4000, scoped, tag = 'input window, operand 1, single buffered']
    #allocation6 [shape = 's32[1]{0}', space=sflag, size = 0x4, scoped, tag = 'scoped memory for tpu_custom_call.1']
    #allocation7 [shape = 'u8[4096]{0}', space=vmem, size = 0x1000, scoped, tag = 'input window, operand 2, single buffered']
    #allocation8 [shape = 'u8[262144]{0}', space=vmem, size = 0x40000, scoped, tag = 'input window, operand 3, single buffered']
    #allocation9 [shape = 's32[1]{0}', space=sflag, size = 0x4, scoped, tag = 'scoped memory for tpu_custom_call.1']
    #allocation10 [shape = 'u8[4096]{0}', space=vmem, size = 0x1000, scoped, tag = 'input window, operand 4, single buffered']
    #allocation11 [shape = 'u8[512]{0}', space=vmem, size = 0x400, scoped, tag = 'output window, operand 0, single buffered']
    %11 = vsyncpa [#allocation3], 0
    %12 = vsyncpa [#allocation6], 0
    %13 = vsyncpa [#allocation9], 0
    %14 = vsyncpa [#allocation4], 0
    // Predicated region
    $region2: #{tpu_custom_call.1} parent=1 // pred_check
      _
    $region3: #{tpu_custom_call.1} parent=1 // pred_check_branch
      %16 = sbr.rel (0) target = $region5
    $region4: #{tpu_custom_call.1} parent=1 // pred_region
      %s18 = ssub.s32 128, 128
      %19 = vsyncadd [#allocation3], %s18
      %s21 = sshll.u32 [#allocation2], 4
      %s22 = int_to_ptr.vmem [resolvable:$true] %s21
      %24 = dma.hbm_to_vmem [thread:$0]  %s0, 128, %s22, [#allocation3]
    $region5: #{tpu_custom_call.1} parent=1 // pred_fallthru
      _
    // Predicated region
    $region6: #{tpu_custom_call.1} parent=1 // pred_check
      _
    $region7: #{tpu_custom_call.1} parent=1 // pred_check_branch
      %26 = sbr.rel (0) target = $region9
    $region8: #{tpu_custom_call.1} parent=1 // pred_region
      %s28 = ssub.s32 512, 512
      %29 = vsyncadd [#allocation6], %s28
      %s30 = sshll.u32 [#allocation5], 4
      %s31 = int_to_ptr.vmem [resolvable:$true] %s30
      %36 = dma.hbm_to_vmem [thread:$0]  %s1, 512, %s31, [#allocation6], 256, 256, 16
    $region9: #{tpu_custom_call.1} parent=1 // pred_fallthru
      _
    // Predicated region
    $region10: #{tpu_custom_call.1} parent=1 // pred_check
      _
    $region11: #{tpu_custom_call.1} parent=1 // pred_check_branch
      %38 = sbr.rel (0) target = $region13
    $region12: #{tpu_custom_call.1} parent=1 // pred_region
      %s40 = ssub.s32 128, 128
      %41 = vsyncadd [#allocation6], %s40
      %s43 = sshll.u32 [#allocation7], 4
      %s44 = int_to_ptr.vmem [resolvable:$true] %s43
      %46 = dma.hbm_to_vmem [thread:$0]  %s2, 128, %s44, [#allocation6]
    $region13: #{tpu_custom_call.1} parent=1 // pred_fallthru
      _
    // Predicated region
    $region14: #{tpu_custom_call.1} parent=1 // pred_check
      _
    $region15: #{tpu_custom_call.1} parent=1 // pred_check_branch
      %48 = sbr.rel (0) target = $region17
    $region16: #{tpu_custom_call.1} parent=1 // pred_region
      %s50 = ssub.s32 8192, 8192
      %51 = vsyncadd [#allocation9], %s50
      %s52 = sshll.u32 [#allocation8], 4
      %s53 = int_to_ptr.vmem [resolvable:$true] %s52
      %58 = dma.hbm_to_vmem [thread:$0]  %s3, 8192, %s53, [#allocation9], 256, 256, 16
    $region17: #{tpu_custom_call.1} parent=1 // pred_fallthru
      _
    // Predicated region
    $region18: #{tpu_custom_call.1} parent=1 // pred_check
      _
    $region19: #{tpu_custom_call.1} parent=1 // pred_check_branch
      %60 = sbr.rel (0) target = $region21
    $region20: #{tpu_custom_call.1} parent=1 // pred_region
      %s62 = ssub.s32 128, 128
      %63 = vsyncadd [#allocation9], %s62
      %s65 = sshll.u32 [#allocation10], 4
      %s66 = int_to_ptr.vmem [resolvable:$true] %s65
      %68 = dma.hbm_to_vmem [thread:$0]  %s4, 128, %s66, [#allocation9]
    $region21: #{tpu_custom_call.1} parent=1 // pred_fallthru
      _
    // Predicated region
    $region22: #{tpu_custom_call.1} parent=1 // pred_check
      _
    $region23: #{tpu_custom_call.1} parent=1 // pred_check_branch
      %70 = sbr.rel (0) target = $region25
    $region24: #{tpu_custom_call.1} parent=1 // pred_region
      _
    $region25: #{tpu_custom_call.1} parent=1 // pred_fallthru
      _
    // Predicated region
    $region26: #{tpu_custom_call.1} parent=1 // pred_check
      _
    $region27: #{tpu_custom_call.1} parent=1 // pred_check_branch
      %72 = sbr.rel (0) target = $region29
    $region28: #{tpu_custom_call.1} parent=1 // pred_region
      %73 = dma.done [#allocation3], 128
    $region29: #{tpu_custom_call.1} parent=1 // pred_fallthru
      _
    // Predicated region
    $region30: #{tpu_custom_call.1} parent=1 // pred_check
      _
    $region31: #{tpu_custom_call.1} parent=1 // pred_check_branch
      %75 = sbr.rel (0) target = $region33
    $region32: #{tpu_custom_call.1} parent=1 // pred_region
      %76 = dma.done [#allocation6], 512
    $region33: #{tpu_custom_call.1} parent=1 // pred_fallthru
      _
    // Predicated region
    $region34: #{tpu_custom_call.1} parent=1 // pred_check
      _
    $region35: #{tpu_custom_call.1} parent=1 // pred_check_branch
      %78 = sbr.rel (0) target = $region37
    $region36: #{tpu_custom_call.1} parent=1 // pred_region
      %79 = dma.done [#allocation6], 128
    $region37: #{tpu_custom_call.1} parent=1 // pred_fallthru
      _
    // Predicated region
    $region38: #{tpu_custom_call.1} parent=1 // pred_check
      _
    $region39: #{tpu_custom_call.1} parent=1 // pred_check_branch
      %81 = sbr.rel (0) target = $region41
    $region40: #{tpu_custom_call.1} parent=1 // pred_region
      %82 = dma.done [#allocation9], 8192
    $region41: #{tpu_custom_call.1} parent=1 // pred_fallthru
      _
    // Predicated region
    $region42: #{tpu_custom_call.1} parent=1 // pred_check
      _
    $region43: #{tpu_custom_call.1} parent=1 // pred_check_branch
      %84 = sbr.rel (0) target = $region45
    $region44: #{tpu_custom_call.1} parent=1 // pred_region
      %85 = dma.done [#allocation9], 128
    $region45: #{tpu_custom_call.1} parent=1 // pred_fallthru
      _
    %v86 = vld [vmem:[#allocation2] sm:$0xff]
    %v87 = vld [vmem:[#allocation5] sm:$0xff]
    %v88 = vld [vmem:[#allocation5 + $0x8] sm:$0xff]
    %v89 = vld [vmem:[#allocation5 + $0x10] sm:$0xff]
    %v90 = vld [vmem:[#allocation5 + $0x18] sm:$0xff]
    %v91 = vld [vmem:[#allocation8] sm:$0xff]
    %v92 = vld [vmem:[#allocation8 + $0x8] sm:$0xff]
    %v93 = vld [vmem:[#allocation8 + $0x10] sm:$0xff]
    %v94 = vld [vmem:[#allocation8 + $0x18] sm:$0xff]
    %v95 = vld [vmem:[#allocation8 + $0x20] sm:$0xff]
    %v96 = vld [vmem:[#allocation8 + $0x28] sm:$0xff]
    %v97 = vld [vmem:[#allocation8 + $0x30] sm:$0xff]
    %v98 = vld [vmem:[#allocation8 + $0x38] sm:$0xff]
    %v99 = vld [vmem:[#allocation8 + $0x40] sm:$0xff]
    %v100 = vld [vmem:[#allocation8 + $0x48] sm:$0xff]
    %v101 = vld [vmem:[#allocation8 + $0x50] sm:$0xff]
    %v102 = vld [vmem:[#allocation8 + $0x58] sm:$0xff]
    %v103 = vld [vmem:[#allocation8 + $0x60] sm:$0xff]
    %v104 = vld [vmem:[#allocation8 + $0x68] sm:$0xff]
    %v105 = vld [vmem:[#allocation8 + $0x70] sm:$0xff]
    %v106 = vld [vmem:[#allocation8 + $0x78] sm:$0xff]
    %v107 = vld [vmem:[#allocation8 + $0x80] sm:$0xff]
    %v108 = vld [vmem:[#allocation8 + $0x88] sm:$0xff]
    %v109 = vld [vmem:[#allocation8 + $0x90] sm:$0xff]
    %v110 = vld [vmem:[#allocation8 + $0x98] sm:$0xff]
    %v111 = vld [vmem:[#allocation8 + $0xa0] sm:$0xff]
    %v112 = vld [vmem:[#allocation8 + $0xa8] sm:$0xff]
    %v113 = vld [vmem:[#allocation8 + $0xb0] sm:$0xff]
    %v114 = vld [vmem:[#allocation8 + $0xb8] sm:$0xff]
    %v115 = vld [vmem:[#allocation8 + $0xc0] sm:$0xff]
    %v116 = vld [vmem:[#allocation8 + $0xc8] sm:$0xff]
    %v117 = vld [vmem:[#allocation8 + $0xd0] sm:$0xff]
    %v118 = vld [vmem:[#allocation8 + $0xd8] sm:$0xff]
    %v119 = vld [vmem:[#allocation8 + $0xe0] sm:$0xff]
    %v120 = vld [vmem:[#allocation8 + $0xe8] sm:$0xff]
    %v121 = vld [vmem:[#allocation8 + $0xf0] sm:$0xff]
    %v122 = vld [vmem:[#allocation8 + $0xf8] sm:$0xff]
    %v123 = vld [vmem:[#allocation8 + $0x100] sm:$0xff]
    %v124 = vld [vmem:[#allocation8 + $0x108] sm:$0xff]
    %v125 = vld [vmem:[#allocation8 + $0x110] sm:$0xff]
    %v126 = vld [vmem:[#allocation8 + $0x118] sm:$0xff]
    %v127 = vld [vmem:[#allocation8 + $0x120] sm:$0xff]
    %v128 = vld [vmem:[#allocation8 + $0x128] sm:$0xff]
    %v129 = vld [vmem:[#allocation8 + $0x130] sm:$0xff]
    %v130 = vld [vmem:[#allocation8 + $0x138] sm:$0xff]
    %v131 = vld [vmem:[#allocation8 + $0x140] sm:$0xff]
    %v132 = vld [vmem:[#allocation8 + $0x148] sm:$0xff]
    %v133 = vld [vmem:[#allocation8 + $0x150] sm:$0xff]
    %v134 = vld [vmem:[#allocation8 + $0x158] sm:$0xff]
    %v135 = vld [vmem:[#allocation8 + $0x160] sm:$0xff]
    %v136 = vld [vmem:[#allocation8 + $0x168] sm:$0xff]
    %v137 = vld [vmem:[#allocation8 + $0x170] sm:$0xff]
    %v138 = vld [vmem:[#allocation8 + $0x178] sm:$0xff]
    %v139 = vld [vmem:[#allocation8 + $0x180] sm:$0xff]
    %v140 = vld [vmem:[#allocation8 + $0x188] sm:$0xff]
    %v141 = vld [vmem:[#allocation8 + $0x190] sm:$0xff]
    %v142 = vld [vmem:[#allocation8 + $0x198] sm:$0xff]
    %v143 = vld [vmem:[#allocation8 + $0x1a0] sm:$0xff]
    %v144 = vld [vmem:[#allocation8 + $0x1a8] sm:$0xff]
    %v145 = vld [vmem:[#allocation8 + $0x1b0] sm:$0xff]
    %v146 = vld [vmem:[#allocation8 + $0x1b8] sm:$0xff]
    %v147 = vld [vmem:[#allocation8 + $0x1c0] sm:$0xff]
    %v148 = vld [vmem:[#allocation8 + $0x1c8] sm:$0xff]
    %v149 = vld [vmem:[#allocation8 + $0x1d0] sm:$0xff]
    %v150 = vld [vmem:[#allocation8 + $0x1d8] sm:$0xff]
    %v151 = vld [vmem:[#allocation8 + $0x1e0] sm:$0xff]
    %v152 = vld [vmem:[#allocation8 + $0x1e8] sm:$0xff]
    %v153 = vld [vmem:[#allocation8 + $0x1f0] sm:$0xff]
    %v154 = vld [vmem:[#allocation8 + $0x1f8] sm:$0xff]
    %v155 = vld [vmem:[#allocation7] sm:$0x77]
    %v157 = vlaneseq
    %v158 = vshrl.u32 %v157, 7
    %v159 = vsub.s32 0, %v158
    %v160 = vrot.slane %v155, %v159
    %v161 = vlaneseq
    %v162 = vshrl.u32 %v161, 7
    %v163 = vsub.s32 4, %v162
    %v164 = vrot.slane %v155, %v163
    %v167 = vlaneseq
    %v168 = vshrl.u32 %v167, 7
    %v169 = vsub.s32 0, %v168
    %v170 = vrot.slane %v160, %v169
    %v171 = vlaneseq
    %v172 = vshrl.u32 %v171, 7
    %v173 = vsub.s32 0, %v172
    %v174 = vrot.slane %v164, %v173
    %vm175 = vcmask 130048
    %v177 = vsel %vm175, %v86, 0
    %179 = vmatprep.subr.mxu0 0.0
    %180 = vmatpush1.msra.mxu0 0.0
    %181 = vmatprep.subr.mxu0 0.0
    %182 = vmatpush1.msra.mxu0 0.0
    %183 = vmatprep.subr.mxu0 0.0
    %184 = vmatpush1.msra.mxu0 0.0
    %185 = vmatprep.subr.mxu0 0.0
    %186 = vmatpush1.msra.mxu0 0.0
    %187 = vmatprep.subr.mxu0 0.0
    %188 = vmatpush1.msra.mxu0 0.0
    %189 = vmatprep.subr.mxu0 0.0
    %190 = vmatpush1.msra.mxu0 0.0
    %191 = vmatprep.subr.mxu0 0.0
    %192 = vmatpush1.msra.mxu0 0.0
    %193 = vmatprep.subr.mxu0 0.0
    %194 = vmatpush1.msra.mxu0 0.0
    %195 = vmatprep.subr.mxu0 0.0
    %196 = vmatpush1.msra.mxu0 0.0
    %197 = vmatprep.subr.mxu0 0.0
    %198 = vmatpush1.msra.mxu0 0.0
    %199 = vmatprep.subr.mxu0 0.0
    %200 = vmatpush1.msra.mxu0 0.0
    %201 = vmatprep.subr.mxu0 0.0
    %202 = vmatpush1.msra.mxu0 0.0
    %203 = vmatprep.subr.mxu0 0.0
    %204 = vmatpush1.msra.mxu0 0.0
    %205 = vmatprep.subr.mxu0 0.0
    %206 = vmatpush1.msra.mxu0 0.0
    %207 = vmatprep.subr.mxu0 %v90
    %208 = vmatpush1.msra.mxu0 %v89
    %209 = vmatprep.subr.mxu0 %v88
    %210 = vmatpush1.msra.mxu0 %v87
    %211 = vmatprep.subr.mxu0 0.0
    %212 = vmatpush2.msra.mxu0 0.0
    %213 = vmatprep.subr.mxu0 0.0
    %214 = vmatpush2.msra.mxu0 0.0
    %215 = vmatprep.subr.mxu0 0.0
    %216 = vmatpush2.msra.mxu0 0.0
    %217 = vmatprep.subr.mxu0 0.0
    %218 = vmatpush2.msra.mxu0 0.0
    %219 = vmatprep.subr.mxu0 0.0
    %220 = vmatpush2.msra.mxu0 0.0
    %221 = vmatprep.subr.mxu0 0.0
    %222 = vmatpush2.msra.mxu0 0.0
    %223 = vmatprep.subr.mxu0 0.0
    %224 = vmatpush2.msra.mxu0 0.0
    %225 = vmatprep.subr.mxu0 0.0
    %226 = vmatpush2.msra.mxu0 0.0
    %227 = vmatprep.subr.mxu0 0.0
    %228 = vmatpush2.msra.mxu0 0.0
    %229 = vmatprep.subr.mxu0 0.0
    %230 = vmatpush2.msra.mxu0 0.0
    %231 = vmatprep.subr.mxu0 0.0
    %232 = vmatpush2.msra.mxu0 0.0
    %233 = vmatprep.subr.mxu0 0.0
    %234 = vmatpush2.msra.mxu0 0.0
    %235 = vmatprep.subr.mxu0 0.0
    %236 = vmatpush2.msra.mxu0 0.0
    %237 = vmatprep.subr.mxu0 0.0
    %238 = vmatpush2.msra.mxu0 0.0
    %239 = vmatprep.subr.mxu0 0.0
    %240 = vmatpush2.msra.mxu0 0.0
    %241 = vmatprep.subr.mxu0 0.0
    %242 = vmatpush2.msra.mxu0 0.0
    %243 = vmatprep.mubr.f32.mxu0 0.0
    %244 = vmatmul.mubr.f32.gmra.mxu0 %v177
    %v245 = vpop.f32.mrf.mxu0
    %v246 = vadd.f32 %v170, %v245
    %v247 = vpop.f32.mrf.mxu0
    %v248 = vadd.f32 %v174, %v247
    %249 = vdwg.mxu0
    %v250 = vadd.f32 %v246, %v248
    %251 = vadd.xlane.f32.xlu0 %v250
    %v252 = vpop.xlane.xlu0 %251
    %v253 = vmul.f32 %v252, 0.00390625
    %v254 = vmul.f32 %v246, %v246
    %v255 = vmul.f32 %v248, %v248
    %v256 = vadd.f32 %v254, %v255
    %257 = vadd.xlane.f32.xlu0 %v256
    %v258 = vpop.xlane.xlu0 %257
    %v259 = vmul.f32 %v258, 0.00390625
    %v260 = vmul.f32 %v253, %v253
    %v261 = vsub.f32 %v259, %v260
    %v262 = vmax.f32 %v261, 0.0
    %v263 = vsub.f32 %v246, %v253
    %v264 = vsub.f32 %v248, %v253
    %v265 = vadd.f32 %v262, 1e-05
    %v266 = vrsqrt.pop %v265
    %v267 = vmul.f32 %v263, %v266
    %v268 = vmul.f32 %v264, %v266
    %v269 = vlaneseq
    %v270 = vshrl.u32 %v269, 7
    %v271 = vsub.s32 1, %v270
    %v272 = vrot.slane %v155, %v271
    %v273 = vlaneseq
    %v274 = vshrl.u32 %v273, 7
    %v275 = vsub.s32 5, %v274
    %v276 = vrot.slane %v155, %v275
    %v279 = vlaneseq
    %v280 = vshrl.u32 %v279, 7
    %v281 = vsub.s32 1, %v280
    %v282 = vrot.slane %v272, %v281
    %v283 = vlaneseq
    %v284 = vshrl.u32 %v283, 7
    %v285 = vsub.s32 1, %v284
    %v286 = vrot.slane %v276, %v285
    %v287 = vmul.f32 %v267, %v282
    %v288 = vmul.f32 %v268, %v286
    %v289 = vlaneseq
    %v290 = vshrl.u32 %v289, 7
    %v291 = vsub.s32 2, %v290
    %v292 = vrot.slane %v155, %v291
    %v293 = vlaneseq
    %v294 = vshrl.u32 %v293, 7
    %v295 = vsub.s32 6, %v294
    %v296 = vrot.slane %v155, %v295
    %v299 = vlaneseq
    %v300 = vshrl.u32 %v299, 7
    %v301 = vsub.s32 2, %v300
    %v302 = vrot.slane %v292, %v301
    %v303 = vlaneseq
    %v304 = vshrl.u32 %v303, 7
    %v305 = vsub.s32 2, %v304
    %v306 = vrot.slane %v296, %v305
    %v307 = vadd.f32 %v287, %v302
    %v308 = vadd.f32 %v288, %v306
    %v309 = vmax.f32 %v307, 0.0
    %v310 = vmax.f32 %v308, 0.0
    %v311 = vld [vmem:[#allocation10] sm:$0x77]
    %v313 = vlaneseq
    %v314 = vshrl.u32 %v313, 7
    %v315 = vsub.s32 0, %v314
    %v316 = vrot.slane %v311, %v315
    %v317 = vlaneseq
    %v318 = vshrl.u32 %v317, 7
    %v319 = vsub.s32 4, %v318
    %v320 = vrot.slane %v311, %v319
    %v323 = vlaneseq
    %v324 = vshrl.u32 %v323, 7
    %v325 = vsub.s32 0, %v324
    %v326 = vrot.slane %v316, %v325
    %v327 = vlaneseq
    %v328 = vshrl.u32 %v327, 7
    %v329 = vsub.s32 0, %v328
    %v330 = vrot.slane %v320, %v329
    %331 = vmatprep.subr.mxu0 %v122
    %332 = vmatpush1.msra.mxu0 %v121
    %333 = vmatprep.subr.mxu0 %v120
    %334 = vmatpush1.msra.mxu0 %v119
    %335 = vmatprep.subr.mxu0 %v118
    %336 = vmatpush1.msra.mxu0 %v117
    %337 = vmatprep.subr.mxu0 %v116
    %338 = vmatpush1.msra.mxu0 %v115
    %339 = vmatprep.subr.mxu0 %v114
    %340 = vmatpush1.msra.mxu0 %v113
    %341 = vmatprep.subr.mxu0 %v112
    %342 = vmatpush1.msra.mxu0 %v111
    %343 = vmatprep.subr.mxu0 %v110
    %344 = vmatpush1.msra.mxu0 %v109
    %345 = vmatprep.subr.mxu0 %v108
    %346 = vmatpush1.msra.mxu0 %v107
    %347 = vmatprep.subr.mxu0 %v106
    %348 = vmatpush1.msra.mxu0 %v105
    %349 = vmatprep.subr.mxu0 %v104
    %350 = vmatpush1.msra.mxu0 %v103
    %351 = vmatprep.subr.mxu0 %v102
    %352 = vmatpush1.msra.mxu0 %v101
    %353 = vmatprep.subr.mxu0 %v100
    %354 = vmatpush1.msra.mxu0 %v99
    %355 = vmatprep.subr.mxu0 %v98
    %356 = vmatpush1.msra.mxu0 %v97
    %357 = vmatprep.subr.mxu0 %v96
    %358 = vmatpush1.msra.mxu0 %v95
    %359 = vmatprep.subr.mxu0 %v94
    %360 = vmatpush1.msra.mxu0 %v93
    %361 = vmatprep.subr.mxu0 %v92
    %362 = vmatpush1.msra.mxu0 %v91
    %363 = vmatprep.subr.mxu0 %v154
    %364 = vmatpush2.msra.mxu0 %v153
    %365 = vmatprep.subr.mxu0 %v152
    %366 = vmatpush2.msra.mxu0 %v151
    %367 = vmatprep.subr.mxu0 %v150
    %368 = vmatpush2.msra.mxu0 %v149
    %369 = vmatprep.subr.mxu0 %v148
    %370 = vmatpush2.msra.mxu0 %v147
    %371 = vmatprep.subr.mxu0 %v146
    %372 = vmatpush2.msra.mxu0 %v145
    %373 = vmatprep.subr.mxu0 %v144
    %374 = vmatpush2.msra.mxu0 %v143
    %375 = vmatprep.subr.mxu0 %v142
    %376 = vmatpush2.msra.mxu0 %v141
    %377 = vmatprep.subr.mxu0 %v140
    %378 = vmatpush2.msra.mxu0 %v139
    %379 = vmatprep.subr.mxu0 %v138
    %380 = vmatpush2.msra.mxu0 %v137
    %381 = vmatprep.subr.mxu0 %v136
    %382 = vmatpush2.msra.mxu0 %v135
    %383 = vmatprep.subr.mxu0 %v134
    %384 = vmatpush2.msra.mxu0 %v133
    %385 = vmatprep.subr.mxu0 %v132
    %386 = vmatpush2.msra.mxu0 %v131
    %387 = vmatprep.subr.mxu0 %v130
    %388 = vmatpush2.msra.mxu0 %v129
    %389 = vmatprep.subr.mxu0 %v128
    %390 = vmatpush2.msra.mxu0 %v127
    %391 = vmatprep.subr.mxu0 %v126
    %392 = vmatpush2.msra.mxu0 %v125
    %393 = vmatprep.subr.mxu0 %v124
    %394 = vmatpush2.msra.mxu0 %v123
    %395 = vmatprep.mubr.f32.mxu0 %v310
    %396 = vmatmul.mubr.f32.gmra.mxu0 %v309
    %v397 = vpop.f32.mrf.mxu0
    %v398 = vadd.f32 %v326, %v397
    %v399 = vpop.f32.mrf.mxu0
    %v400 = vadd.f32 %v330, %v399
    %401 = vdwg.mxu0
    %v402 = vadd.f32 %v398, %v400
    %403 = vadd.xlane.f32.xlu0 %v402
    %v404 = vpop.xlane.xlu0 %403
    %v405 = vmul.f32 %v404, 0.00390625
    %v406 = vmul.f32 %v398, %v398
    %v407 = vmul.f32 %v400, %v400
    %v408 = vadd.f32 %v406, %v407
    %409 = vadd.xlane.f32.xlu0 %v408
    %v410 = vpop.xlane.xlu0 %409
    %v411 = vmul.f32 %v410, 0.00390625
    %v412 = vmul.f32 %v405, %v405
    %v413 = vsub.f32 %v411, %v412
    %v414 = vmax.f32 %v413, 0.0
    %v415 = vsub.f32 %v398, %v405
    %v416 = vsub.f32 %v400, %v405
    %v417 = vadd.f32 %v414, 1e-05
    %v418 = vrsqrt.pop %v417
    %v419 = vmul.f32 %v415, %v418
    %v420 = vmul.f32 %v416, %v418
    %v421 = vlaneseq
    %v422 = vshrl.u32 %v421, 7
    %v423 = vsub.s32 1, %v422
    %v424 = vrot.slane %v311, %v423
    %v425 = vlaneseq
    %v426 = vshrl.u32 %v425, 7
    %v427 = vsub.s32 5, %v426
    %v428 = vrot.slane %v311, %v427
    %v431 = vlaneseq
    %v432 = vshrl.u32 %v431, 7
    %v433 = vsub.s32 1, %v432
    %v434 = vrot.slane %v424, %v433
    %v435 = vlaneseq
    %v436 = vshrl.u32 %v435, 7
    %v437 = vsub.s32 1, %v436
    %v438 = vrot.slane %v428, %v437
    %v439 = vmul.f32 %v419, %v434
    %v440 = vmul.f32 %v420, %v438
    %v441 = vlaneseq
    %v442 = vshrl.u32 %v441, 7
    %v443 = vsub.s32 2, %v442
    %v444 = vrot.slane %v311, %v443
    %v445 = vlaneseq
    %v446 = vshrl.u32 %v445, 7
    %v447 = vsub.s32 6, %v446
    %v448 = vrot.slane %v311, %v447
    %v451 = vlaneseq
    %v452 = vshrl.u32 %v451, 7
    %v453 = vsub.s32 2, %v452
    %v454 = vrot.slane %v444, %v453
    %v455 = vlaneseq
    %v456 = vshrl.u32 %v455, 7
    %v457 = vsub.s32 2, %v456
    %v458 = vrot.slane %v448, %v457
    %v459 = vadd.f32 %v439, %v454
    %v460 = vadd.f32 %v440, %v458
    %v461 = vmax.f32 %v459, 0.0
    %v462 = vmax.f32 %v460, 0.0
    %v463 = vld [vmem:[%s5] sm:$0xf]
    %v465 = vlaneseq
    %v466 = vshrl.u32 %v465, 7
    %v467 = vsub.s32 0, %v466
    %v468 = vrot.slane %v463, %v467
    %v469 = vlaneseq
    %v470 = vshrl.u32 %v469, 7
    %v471 = vsub.s32 2, %v470
    %v472 = vrot.slane %v463, %v471
    %v475 = vlaneseq
    %v476 = vshrl.u32 %v475, 7
    %v477 = vsub.s32 0, %v476
    %v478 = vrot.slane %v468, %v477
    %v479 = vlaneseq
    %v480 = vshrl.u32 %v479, 7
    %v481 = vsub.s32 0, %v480
    %v482 = vrot.slane %v472, %v481
    %v483 = vmul.f32 %v461, %v478
    %v484 = vmul.f32 %v462, %v482
    %v485 = vadd.f32 %v483, %v484
    %486 = vadd.xlane.f32.xlu0 %v485
    %v487 = vpop.xlane.xlu0 %486
    %488 = vset.pattern.permute.xlu0 0
    %489 = vperm.xlu0 %488, %v463
    %v490 = vpop.permute.xlu0 %489
    %v493 = vunpack.c.l.s4 269488144
    %v494 = vunpack.c.0.s8 %v493
    %v495 = vlaneseq
    %v496 = vshrl.u32 %v495, 7
    %v497 = vsub.s32 %v494, %v496
    %v498 = vrot.slane %v490, %v497
    %v500 = vlaneseq
    %v501 = vshrl.u32 %v500, 7
    %v502 = vsub.s32 1, %v501
    %v503 = vrot.slane %v498, %v502
    %v505 = vadd.f32 %v487, %v503
    %507 = vset.pattern.permute.xlu0 0
    %508 = vperm.xlu0 %507, %v505
    %v509 = vpop.permute.xlu0 %508
    %v510 = vlaneseq
    %v511 = vand.u32 %v510, 127
    %v512 = vlaneseq
    %v513 = vshrl.u32 %v512, 7
    %v514 = vsub.s32 %v511, %v513
    %v515 = vrot.slane %v509, %v514
    %vm517 = vcmask 57344
    %518 = vst.msk [vmem:[#allocation11] sm:$0x1] %vm517, %v515
    // Predicated region
    $region46: #{tpu_custom_call.1} parent=1 // pred_check
      _
    $region47: #{tpu_custom_call.1} parent=1 // pred_check_branch
      %520 = sbr.rel (0) target = $region49
    $region48: #{tpu_custom_call.1} parent=1 // pred_region
      %s522 = ssub.s32 16, 16
      %523 = vsyncadd [#allocation4], %s522
      %s525 = sshll.u32 [#allocation11], 4
      %s526 = int_to_ptr.vmem [resolvable:$true] %s525
      %528 = dma.vmem_to_hbm [thread:$0]  %s526, 16, %s6, [#allocation4]
    $region49: #{tpu_custom_call.1} parent=1 // pred_fallthru
      _
    // Predicated region
    $region50: #{tpu_custom_call.1} parent=1 // pred_check
      _
    $region51: #{tpu_custom_call.1} parent=1 // pred_check_branch
      %530 = sbr.rel (0) target = $region53
    $region52: #{tpu_custom_call.1} parent=1 // pred_region
      %531 = dma.done [#allocation4], 16
    $region53: #{tpu_custom_call.1} parent=1 // pred_fallthru
      _
    %532 = vsyncpa [#allocation3], 1
    %533 = vsyncpa [#allocation6], 1
    %534 = vsyncpa [#allocation9], 1
    %535 = vsyncpa [#allocation4], 1

</llo_original>
